<compile_context>
chip_gen: v7x
topology: tpu7x:2x2x1
jax: 0.10.0
libtpu: 0.0.40
codegen_flags: <defaults>
</compile_context>

<pallas_src>
import functools

import jax
import jax.numpy as jnp
from jax.experimental import pallas as pl
from jax.experimental.pallas import tpu as pltpu


def _ingate_kernel(attr_ref, mm_ref, w_attr_ref, w_mm_ref, out_ref, max_acc,
                   *, n_total, n_tile):
    # attr_ref : (tb, tn, H) VMEM (input dtype, e.g. bf16)
    # mm_ref   : (tb, R,  H) VMEM (input dtype)
    # w_*_ref  : (1, H)      VMEM (f32)
    # out_ref  : (tb, R)     VMEM (f32)
    # max_acc  : (tb, H)     VMEM f32 scratch (running max over the N axis)
    n = pl.program_id(1)

    @pl.when(n == 0)
    def _():
        max_acc[...] = jnp.full_like(max_acc, -jnp.inf)

    attr = attr_ref[...]                                      # (tb, tn, H)
    if n_total % n_tile != 0:
        # Static condition: only emit the tail mask when N % tn != 0, so
        # garbage in the padded tail tile can never corrupt the running max.
        idx = jax.lax.broadcasted_iota(jnp.int32, (1, n_tile, 1), 1)
        valid = n_total - n * n_tile                          # > tn except last tile
        attr = jnp.where(idx < valid, attr,
                         jnp.array(-jnp.inf, dtype=attr.dtype))

    # torch.max(attr_feats, 1)[0]: selection -> exact in any dtype; keep it in
    # the (bf16) input dtype and upcast only the small (tb, H) result.
    tile_max = jnp.max(attr, axis=1).astype(jnp.float32)      # (tb, H)
    max_acc[...] = jnp.maximum(max_acc[...], tile_max)

    @pl.when(n == pl.num_programs(1) - 1)
    def _():
        w_attr = w_attr_ref[...].astype(jnp.float32)          # (1, H)
        w_mm = w_mm_ref[...].astype(jnp.float32)              # (1, H)
        # Linear(H, 1, bias=False) == weight-row multiply + lane-axis reduce
        # (VPU mul + XLU reduce); f32 accumulation.  No MXU width-1 matvec.
        attr_score = jnp.sum(max_acc[...] * w_attr, axis=-1, keepdims=True)  # (tb, 1)
        mm = mm_ref[...].astype(jnp.float32)                  # (tb, R, H)
        mm_score = jnp.sum(mm * w_mm[0], axis=-1)             # (tb, R)
        out_ref[...] = jax.nn.sigmoid(attr_score + mm_score).astype(out_ref.dtype)


def _vmem_limit_bytes():
    """Explicit scoped-VMEM limit derived from the chip's physical VMEM."""
    phys = 128 << 20
    try:
        info = pltpu.get_tpu_info()
        phys = int(getattr(info, "vmem_capacity_bytes", phys))
    except Exception:
        pass
    # ~75% of physical, capped at 64 MiB: v7x (64 MiB physical) -> 48 MiB,
    # v5e/v6e (128 MiB physical) -> 64 MiB.  Leaves headroom for Mosaic.
    return min(3 * phys // 4, 64 << 20)


def _legal_tiles(full):
    """Tile sizes legal for a (second-to-)last block dim: full extent or a multiple of 8."""
    if full <= 8:
        return [full]
    cands = {full} | {8 * k for k in range(1, full // 8 + 1)}
    return sorted(cands, reverse=True)


def _pick_tiles(B, N, R, H, in_itemsize, vmem_limit, min_steps=4):
    """Pick (tb, tn) so everything live per grid step fits under vmem_limit."""
    budget = int(vmem_limit * 0.85)
    cdiv = lambda a, b: -(-a // b)

    def step_bytes(tb, tn):
        attr_io = 2 * tb * tn * H * in_itemsize        # double-buffered input
        mm_io = 2 * tb * R * H * in_itemsize           # double-buffered input
        out_io = 2 * tb * R * 4                        # double-buffered output
        scratch = tb * H * 4                           # running-max accumulator
        temps = (2 * tb * R * H * 4                    # f32 mm upcast + product
                 + tb * tn * H * in_itemsize           # masked attr copy (worst case)
                 + 2 * tb * H * 4)                     # tile_max / attr_score
        weights = 2 * 2 * H * 4
        return attr_io + mm_io + out_io + scratch + temps + weights

    tbs = _legal_tiles(B)
    tns = _legal_tiles(N)

    # 1) Largest N tile that fits alongside the smallest legal batch tile.
    tn = tns[-1]
    for cand in tns:
        if step_bytes(tbs[-1], cand) <= budget:
            tn = cand
            break
    # 2) Largest batch tile that fits with that N tile (round DOWN, never up).
    tb = tbs[-1]
    for cand in tbs:
        if step_bytes(cand, tn) <= budget:
            tb = cand
            break
    # 3) Never collapse the grid: keep >= min_steps steps when the shape allows
    #    it, so double-buffering and the v7x dual-TC split actually engage.
    def steps(tb_, tn_):
        return cdiv(B, tb_) * cdiv(N, tn_)

    while steps(tb, tn) < min_steps:
        smaller_tb = [c for c in tbs if c < tb]
        smaller_tn = [c for c in tns if c < tn]
        if smaller_tb:
            tb = smaller_tb[0]
        elif smaller_tn:
            tn = smaller_tn[0]
        else:
            break
    return tb, tn


def ingate_pallas(attr_feats, mm_feats, w_attr, w_mm):
    B, N, H = attr_feats.shape
    Bm, R, Hm = mm_feats.shape
    assert B == Bm and H == Hm
    assert w_attr.shape == (1, H) and w_mm.shape == (1, H)
    assert attr_feats.dtype == mm_feats.dtype

    in_itemsize = jnp.dtype(attr_feats.dtype).itemsize
    vmem_limit = _vmem_limit_bytes()
    tb, tn = _pick_tiles(B, N, R, H, in_itemsize, vmem_limit)
    grid = (pl.cdiv(B, tb), pl.cdiv(N, tn))

    kernel = functools.partial(_ingate_kernel, n_total=N, n_tile=tn)

    cost = pl.CostEstimate(
        flops=int(B * H * (N + 2 * R + 2) + 2 * B * R),
        transcendentals=int(B * R),
        bytes_accessed=int(in_itemsize * (B * N * H + B * R * H)
                           + 4 * (2 * H + B * R)),
    )

    return pl.pallas_call(
        kernel,
        out_shape=jax.ShapeDtypeStruct((B, R), jnp.float32),
        grid=grid,
        in_specs=[
            # attr tile: walks the batch and N axes.
            pl.BlockSpec((tb, tn, H), lambda b, n: (b, n, 0)),
            # mm tile: depends only on the batch step -> fetched once per b.
            pl.BlockSpec((tb, R, H), lambda b, n: (b, 0, 0)),
            # weights: tiny, replicated to every grid step.
            pl.BlockSpec((1, H), lambda b, n: (0, 0)),
            pl.BlockSpec((1, H), lambda b, n: (0, 0)),
        ],
        # Output block is revisited across the N (reduction) axis.
        out_specs=pl.BlockSpec((tb, R), lambda b, n: (b, 0)),
        scratch_shapes=[pltpu.VMEM((tb, H), jnp.float32)],
        compiler_params=pltpu.CompilerParams(
            dimension_semantics=("parallel", "arbitrary"),
            vmem_limit_bytes=int(vmem_limit)),
        cost_estimate=cost,
    )(attr_feats, mm_feats, w_attr, w_mm)


def ingate_reference(attr_feats, mm_feats, w_attr, w_mm):
    # Pure-JAX reference of the PyTorch module (Linear(H,1,bias=False) is a
    # weight-row multiply + sum), computed in f32 on the same inputs.
    attr = attr_feats.astype(jnp.float32)
    mm = mm_feats.astype(jnp.float32)
    attr_max = jnp.max(attr, axis=1)                                     # (B, H)
    attr_score = jnp.sum(attr_max * w_attr[0], axis=-1, keepdims=True)   # (B, 1)
    mm_score = jnp.sum(mm * w_mm[0], axis=-1)                            # (B, R)
    return jax.nn.sigmoid(attr_score + mm_score)


if __name__ == "__main__":
    key = jax.random.PRNGKey(0)
    k1, k2, k3, k4 = jax.random.split(key, 4)

    B, N, R, H = 2, 8, 8, 32

    # Activations shipped to the kernel as bf16 (halves HBM traffic on this
    # purely bandwidth-bound kernel); weights stay f32.
    attr_feats = jax.random.normal(k1, (B, N, H), dtype=jnp.float32).astype(jnp.bfloat16)
    mm_feats = jax.random.normal(k2, (B, R, H), dtype=jnp.float32).astype(jnp.bfloat16)

    # nn.Linear(hidden_size, 1, bias=False) weights, shape (1, H).
    bound = 1.0 / (H ** 0.5)
    w_attr = jax.random.uniform(k3, (1, H), minval=-bound, maxval=bound,
                                dtype=jnp.float32)
    w_mm = jax.random.uniform(k4, (1, H), minval=-bound, maxval=bound,
                              dtype=jnp.float32)

    out = ingate_pallas(attr_feats, mm_feats, w_attr, w_mm)
    out = jax.block_until_ready(out)

    ref = ingate_reference(attr_feats, mm_feats, w_attr, w_mm)
    assert out.shape == (B, R)
    assert jnp.allclose(out, ref, atol=1e-4, rtol=1e-4), \
        float(jnp.max(jnp.abs(out - ref)))

    print("KERNEL_OK")
</pallas_src>

<mosaic_0001>
module attributes {stable_mosaic.version = 11 : i64} {
  func.func @_ingate_kernel(%arg0: i32, %arg1: i32, %arg2: memref<2x8x32xbf16, #tpu.memory_space<vmem>>, %arg3: memref<2x8x32xbf16, #tpu.memory_space<vmem>>, %arg4: memref<1x32xf32, #tpu.memory_space<vmem>>, %arg5: memref<1x32xf32, #tpu.memory_space<vmem>>, %arg6: memref<2x8xf32, #tpu.memory_space<vmem>>, %arg7: memref<2x32xf32, #tpu.memory_space<vmem>>) attributes {dimension_semantics = [#tpu.dimension_semantics<parallel>, #tpu.dimension_semantics<arbitrary>], iteration_bounds = array<i64: 1, 1>, scalar_prefetch = 0 : i64, scratch_operands = 1 : i64, tpu.core_type = #tpu.core_type<tc>, window_params = [{transform_indices = @transform_0, window_bounds = array<i64: 2, 8, 32>}, {transform_indices = @transform_1, window_bounds = array<i64: 2, 8, 32>}, {pipeline_mode = #tpu.pipeline_mode<synchronous>, transform_indices = @transform_2, window_bounds = array<i64: 1, 32>}, {pipeline_mode = #tpu.pipeline_mode<synchronous>, transform_indices = @transform_3, window_bounds = array<i64: 1, 32>}, {transform_indices = @transform_4, window_bounds = array<i64: 2, 8>}]} {
    %c0_i32 = arith.constant 0 : i32
    %0 = arith.cmpi eq, %arg1, %c0_i32 : i32
    %1 = arith.extui %0 : i1 to i32
    %c0_i32_0 = arith.constant 0 : i32
    %2 = arith.cmpi ne, %1, %c0_i32_0 : i32
    scf.if %2 {
      %cst_9 = arith.constant 0xFF800000 : f32
      %12 = vector.broadcast %cst_9 : f32 to vector<2x32xf32>
      %c0_10 = arith.constant 0 : index
      %c0_11 = arith.constant 0 : index
      %13 = vector.load %arg7[%c0_10, %c0_11] : memref<2x32xf32, #tpu.memory_space<vmem>>, vector<2x32xf32>
      tpu.vector_store %arg7[%c0_10, %c0_11], %12 {strides = array<i32>} : memref<2x32xf32, #tpu.memory_space<vmem>>, vector<2x32xf32>,
    } else {
    }
    %c0 = arith.constant 0 : index
    %c0_1 = arith.constant 0 : index
    %c0_2 = arith.constant 0 : index
    %3 = vector.load %arg2[%c0, %c0_1, %c0_2] : memref<2x8x32xbf16, #tpu.memory_space<vmem>>, vector<2x8x32xbf16>
    %cst = arith.constant dense<0xFF80> : vector<2x32xbf16>
    %4 = vector.multi_reduction <maximumf>, %3, %cst [1] : vector<2x8x32xbf16> to vector<2x32xbf16>
    %5 = arith.extf %4 : vector<2x32xbf16> to vector<2x32xf32>
    %c0_3 = arith.constant 0 : index
    %c0_4 = arith.constant 0 : index
    %6 = vector.load %arg7[%c0_3, %c0_4] : memref<2x32xf32, #tpu.memory_space<vmem>>, vector<2x32xf32>
    %7 = arith.maximumf %6, %5 : vector<2x32xf32>
    %c0_5 = arith.constant 0 : index
    %c0_6 = arith.constant 0 : index
    %8 = vector.load %arg7[%c0_5, %c0_6] : memref<2x32xf32, #tpu.memory_space<vmem>>, vector<2x32xf32>
    tpu.vector_store %arg7[%c0_5, %c0_6], %7 {strides = array<i32>} : memref<2x32xf32, #tpu.memory_space<vmem>>, vector<2x32xf32>,
    %c0_i32_7 = arith.constant 0 : i32
    %9 = arith.cmpi eq, %arg1, %c0_i32_7 : i32
    %10 = arith.extui %9 : i1 to i32
    %c0_i32_8 = arith.constant 0 : i32
    %11 = arith.cmpi ne, %10, %c0_i32_8 : i32
    scf.if %11 {
      %c0_9 = arith.constant 0 : index
      %c0_10 = arith.constant 0 : index
      %12 = vector.load %arg4[%c0_9, %c0_10] : memref<1x32xf32, #tpu.memory_space<vmem>>, vector<1x32xf32>
      %c0_11 = arith.constant 0 : index
      %c0_12 = arith.constant 0 : index
      %13 = vector.load %arg5[%c0_11, %c0_12] : memref<1x32xf32, #tpu.memory_space<vmem>>, vector<1x32xf32>
      %c0_13 = arith.constant 0 : index
      %c0_14 = arith.constant 0 : index
      %14 = vector.load %arg7[%c0_13, %c0_14] : memref<2x32xf32, #tpu.memory_space<vmem>>, vector<2x32xf32>
      %15 = vector.broadcast %12 : vector<1x32xf32> to vector<2x32xf32>
      %16 = arith.mulf %14, %15 : vector<2x32xf32>
      %cst_15 = arith.constant dense<0.000000e+00> : vector<2xf32>
      %17 = vector.multi_reduction <add>, %16, %cst_15 [1] : vector<2x32xf32> to vector<2xf32>
      %18 = vector.shape_cast %17 : vector<2xf32> to vector<2x1xf32>
      %c0_16 = arith.constant 0 : index
      %c0_17 = arith.constant 0 : index
      %c0_18 = arith.constant 0 : index
      %19 = vector.load %arg3[%c0_16, %c0_17, %c0_18] : memref<2x8x32xbf16, #tpu.memory_space<vmem>>, vector<2x8x32xbf16>
      %20 = arith.extf %19 : vector<2x8x32xbf16> to vector<2x8x32xf32>
      %21 = vector.shape_cast %13 : vector<1x32xf32> to vector<32xf32>
      %22 = vector.shape_cast %21 : vector<32xf32> to vector<1x1x32xf32>
      %23 = vector.broadcast %22 : vector<1x1x32xf32> to vector<2x8x32xf32>
      %24 = arith.mulf %20, %23 : vector<2x8x32xf32>
      %cst_19 = arith.constant dense<0.000000e+00> : vector<2x8xf32>
      %25 = vector.multi_reduction <add>, %24, %cst_19 [2] : vector<2x8x32xf32> to vector<2x8xf32>
      %26 = vector.broadcast %18 : vector<2x1xf32> to vector<2x8xf32>
      %27 = arith.addf %26, %25 : vector<2x8xf32>
      %28 = arith.negf %27 : vector<2x8xf32>
      %29 = math.exp %28 : vector<2x8xf32>
      %cst_20 = arith.constant 1.000000e+00 : f32
      %30 = vector.broadcast %cst_20 : f32 to vector<2x8xf32>
      %31 = arith.addf %30, %29 : vector<2x8xf32>
      %32 = arith.divf %30, %31 : vector<2x8xf32>
      %c0_21 = arith.constant 0 : index
      %c0_22 = arith.constant 0 : index
      %33 = vector.load %arg6[%c0_21, %c0_22] : memref<2x8xf32, #tpu.memory_space<vmem>>, vector<2x8xf32>
      tpu.vector_store %arg6[%c0_21, %c0_22], %32 {strides = array<i32>} : memref<2x8xf32, #tpu.memory_space<vmem>>, vector<2x8xf32>,
    } else {
    }
    return
  }
  func.func @transform_0(%arg0: i32, %arg1: i32) -> (i32, i32, i32) {
    %c0_i32 = arith.constant 0 : i32
    %c0_i32_0 = arith.constant 0 : i32
    return %arg0, %arg1, %c0_i32 : i32, i32, i32
  }
  func.func @transform_1(%arg0: i32, %arg1: i32) -> (i32, i32, i32) {
    %c0_i32 = arith.constant 0 : i32
    %c0_i32_0 = arith.constant 0 : i32
    %c0_i32_1 = arith.constant 0 : i32
    return %arg0, %c0_i32, %c0_i32_0 : i32, i32, i32
  }
  func.func @transform_2(%arg0: i32, %arg1: i32) -> (i32, i32) {
    %c0_i32 = arith.constant 0 : i32
    %c0_i32_0 = arith.constant 0 : i32
    %c0_i32_1 = arith.constant 0 : i32
    return %c0_i32, %c0_i32_0 : i32, i32
  }
  func.func @transform_3(%arg0: i32, %arg1: i32) -> (i32, i32) {
    %c0_i32 = arith.constant 0 : i32
    %c0_i32_0 = arith.constant 0 : i32
    %c0_i32_1 = arith.constant 0 : i32
    return %c0_i32, %c0_i32_0 : i32, i32
  }
  func.func @transform_4(%arg0: i32, %arg1: i32) -> (i32, i32) {
    %c0_i32 = arith.constant 0 : i32
    %c0_i32_0 = arith.constant 0 : i32
    return %arg0, %c0_i32 : i32, i32
  }
}

</mosaic_0001>

<llo_original>
// kernel: tpu_custom_call.1
$region0: #{tpu_custom_call.1}
  #allocation0 [shape = 'u32[]', space=smem, size = 0x4, offset = 0x4, fixed_abs, tag = 'smem constant byte address 0x4 - core index']
  #allocation1 [shape = 'u32[144,128]{1,0:T(1,128)}', space=vmem, size = 0x12000, scoped, tag = 'internal scratch']
  #allocation2 [shape = 'f32[2,32]{1,0:T(2,128)}', space=vmem, size = 0x400, scoped, tag = 'scratch operand']
  %s0 = inlined_call_operand.hbm [shape: bf16[2,8,32], index: 0, kind: input, shape index: {}]
  %s1 = inlined_call_operand.hbm [shape: bf16[2,8,32], index: 1, kind: input, shape index: {}]
  %s2 = inlined_call_operand.hbm [shape: f32[1,32], index: 2, kind: input, shape index: {}]
  %s3 = inlined_call_operand.hbm [shape: f32[1,32], index: 3, kind: input, shape index: {}]
  %s4 = inlined_call_operand.hbm [shape: f32[2,8], index: 4, kind: output, shape index: {}]
  %s5 = sld [smem:[#allocation0]]
  $region50: #{tpu_custom_call.1} parent=0
    _
  %s7 = ssub.s32 1, %s5
  %s8 = scalar_select 0, %s7, %s5
  $region1: #{tpu_custom_call.1} parent=0
    #allocation3 [shape = 'u8[4096]{0}', space=vmem, size = 0x1000, scoped, tag = 'input window, operand 0, single buffered']
    #allocation4 [shape = 's32[1]{0}', space=sflag, size = 0x4, scoped, tag = 'scoped memory for tpu_custom_call.1']
    #allocation5 [shape = 's32[1]{0}', space=sflag, size = 0x4, scoped, tag = 'scoped memory for tpu_custom_call.1']
    #allocation6 [shape = 'u8[4096]{0}', space=vmem, size = 0x1000, scoped, tag = 'input window, operand 1, single buffered']
    #allocation7 [shape = 's32[1]{0}', space=sflag, size = 0x4, scoped, tag = 'scoped memory for tpu_custom_call.1']
    #allocation8 [shape = 'u8[512]{0}', space=vmem, size = 0x400, scoped, tag = 'input window, operand 2, single buffered']
    #allocation9 [shape = 'u8[512]{0}', space=vmem, size = 0x400, scoped, tag = 'input window, operand 3, single buffered']
    #allocation10 [shape = 's32[1]{0}', space=sflag, size = 0x4, scoped, tag = 'scoped memory for tpu_custom_call.1']
    #allocation11 [shape = 'u8[1024]{0}', space=vmem, size = 0x400, scoped, tag = 'output window, operand 0, single buffered']
    %9 = vsyncpa [#allocation4], 0
    %10 = vsyncpa [#allocation7], 0
    %11 = vsyncpa [#allocation10], 0
    %12 = vsyncpa [#allocation5], 0
    // Predicated region
    $region2: #{tpu_custom_call.1} parent=1 // pred_check
      _
    $region3: #{tpu_custom_call.1} parent=1 // pred_check_branch
      %14 = sbr.rel (0) target = $region5
    $region4: #{tpu_custom_call.1} parent=1 // pred_region
      %s16 = ssub.s32 128, 128
      %17 = vsyncadd [#allocation4], %s16
      %s18 = sshll.u32 [#allocation3], 4
      %s19 = int_to_ptr.vmem [resolvable:$true] %s18
      %24 = dma.hbm_to_vmem [thread:$0]  %s0, 128, %s19, [#allocation4], 64, 64, 4
    $region5: #{tpu_custom_call.1} parent=1 // pred_fallthru
      _
    // Predicated region
    $region6: #{tpu_custom_call.1} parent=1 // pred_check
      _
    $region7: #{tpu_custom_call.1} parent=1 // pred_check_branch
      %26 = sbr.rel (0) target = $region9
    $region8: #{tpu_custom_call.1} parent=1 // pred_region
      %s28 = ssub.s32 128, 128
      %29 = vsyncadd [#allocation7], %s28
      %s30 = sshll.u32 [#allocation6], 4
      %s31 = int_to_ptr.vmem [resolvable:$true] %s30
      %36 = dma.hbm_to_vmem [thread:$0]  %s1, 128, %s31, [#allocation7], 64, 64, 4
    $region9: #{tpu_custom_call.1} parent=1 // pred_fallthru
      _
    // Predicated region
    $region10: #{tpu_custom_call.1} parent=1 // pred_check
      _
    $region11: #{tpu_custom_call.1} parent=1 // pred_check_branch
      %38 = sbr.rel (0) target = $region13
    $region12: #{tpu_custom_call.1} parent=1 // pred_region
      %s40 = ssub.s32 16, 16
      %41 = vsyncadd [#allocation7], %s40
      %s43 = sshll.u32 [#allocation8], 4
      %s44 = int_to_ptr.vmem [resolvable:$true] %s43
      %46 = dma.hbm_to_vmem [thread:$0]  %s2, 16, %s44, [#allocation7]
    $region13: #{tpu_custom_call.1} parent=1 // pred_fallthru
      _
    // Predicated region
    $region14: #{tpu_custom_call.1} parent=1 // pred_check
      _
    $region15: #{tpu_custom_call.1} parent=1 // pred_check_branch
      %48 = sbr.rel (0) target = $region17
    $region16: #{tpu_custom_call.1} parent=1 // pred_region
      %s50 = ssub.s32 16, 16
      %51 = vsyncadd [#allocation10], %s50
      %s53 = sshll.u32 [#allocation9], 4
      %s54 = int_to_ptr.vmem [resolvable:$true] %s53
      %56 = dma.hbm_to_vmem [thread:$0]  %s3, 16, %s54, [#allocation10]
    $region17: #{tpu_custom_call.1} parent=1 // pred_fallthru
      _
    // Predicated region
    $region18: #{tpu_custom_call.1} parent=1 // pred_check
      _
    $region19: #{tpu_custom_call.1} parent=1 // pred_check_branch
      %58 = sbr.rel (0) target = $region21
    $region20: #{tpu_custom_call.1} parent=1 // pred_region
      %59 = dma.done [#allocation4], 128
    $region21: #{tpu_custom_call.1} parent=1 // pred_fallthru
      _
    // Predicated region
    $region22: #{tpu_custom_call.1} parent=1 // pred_check
      _
    $region23: #{tpu_custom_call.1} parent=1 // pred_check_branch
      %61 = sbr.rel (0) target = $region25
    $region24: #{tpu_custom_call.1} parent=1 // pred_region
      %62 = dma.done [#allocation7], 128
    $region25: #{tpu_custom_call.1} parent=1 // pred_fallthru
      _
    // Predicated region
    $region26: #{tpu_custom_call.1} parent=1 // pred_check
      _
    $region27: #{tpu_custom_call.1} parent=1 // pred_check_branch
      %64 = sbr.rel (0) target = $region29
    $region28: #{tpu_custom_call.1} parent=1 // pred_region
      %65 = dma.done [#allocation7], 16
    $region29: #{tpu_custom_call.1} parent=1 // pred_fallthru
      _
    // Predicated region
    $region30: #{tpu_custom_call.1} parent=1 // pred_check
      _
    $region31: #{tpu_custom_call.1} parent=1 // pred_check_branch
      %67 = sbr.rel (0) target = $region33
    $region32: #{tpu_custom_call.1} parent=1 // pred_region
      %68 = dma.done [#allocation10], 16
    $region33: #{tpu_custom_call.1} parent=1 // pred_fallthru
      _
    %p70 = scmp.eq.s32.totalorder 0, 0
    // Predicated region
    $region34: #{tpu_custom_call.1} parent=1 // pred_check
      %p71 = pneg %p70
    $region35: #{tpu_custom_call.1} parent=1 // pred_check_branch
      %73 = sbr.rel (%p71) target = $region37
    $region36: #{tpu_custom_call.1} parent=1 // pred_region
      %vm74 = vcmask 254976
      %75 = vst.msk [vmem:[#allocation2] sm:$0x3] %vm74, -inf
    $region37: #{tpu_custom_call.1} parent=1 // pred_fallthru
      _
    %v76 = vld [vmem:[#allocation3] sm:$0xf]
    %v77 = vld [vmem:[#allocation3 + $0x4] sm:$0xf]
    %vm78 = vcmask 257024
    %v81 = vsel %vm78, %v76, 4286644096
    %v83 = vunpack.i.l.bf16 %v81
    %v84 = vunpack.i.h.bf16 %v81
    %v85 = vmax.f32 %v83, %v84
    %v86 = vrot.slane %v85, 4
    %v87 = vmax.f32 %v85, %v86
    %v88 = vrot.slane %v87, 2
    %v89 = vmax.f32 %v87, %v88
    %v90 = vrot.slane %v89, 1
    %v91 = vmax.f32 %v89, %v90
    %v92 = vpack.i.bf16 %v91, %v91
    %v94 = vsel %vm78, %v77, 4286644096
    %v96 = vunpack.i.l.bf16 %v94
    %v97 = vunpack.i.h.bf16 %v94
    %v98 = vmax.f32 %v96, %v97
    %v99 = vrot.slane %v98, 4
    %v100 = vmax.f32 %v98, %v99
    %v101 = vrot.slane %v100, 2
    %v102 = vmax.f32 %v100, %v101
    %v103 = vrot.slane %v102, 1
    %v104 = vmax.f32 %v102, %v103
    %v105 = vpack.i.bf16 %v104, %v104
    %v106 = vunpack.c.l.bf16 %v92
    %v107 = vunpack.c.l.bf16 %v105
    %v108 = vld [vmem:[#allocation2] sm:$0x3]
    %vm111 = vcmask 1041409
    %v112 = vsel %vm111, %v107, %v106
    %v114 = vmax.f32 %v108, %v112
    %vm115 = vcmask 254976
    %116 = vst.msk [vmem:[#allocation2] sm:$0x3] %vm115, %v114
    // Predicated region
    $region38: #{tpu_custom_call.1} parent=1 // pred_check
      %p117 = pneg %p70
    $region39: #{tpu_custom_call.1} parent=1 // pred_check_branch
      %119 = sbr.rel (%p117) target = $region41
    $region40: #{tpu_custom_call.1} parent=1 // pred_region
      %v120 = vld [vmem:[#allocation8] sm:$0x1]
      %v121 = vld [vmem:[#allocation9] sm:$0x1]
      %v122 = vld [vmem:[#allocation2] sm:$0x3]
      %v124 = vlaneseq
      %v125 = vshrl.u32 %v124, 7
      %v126 = vsub.s32 0, %v125
      %v127 = vrot.slane %v120, %v126
      %v129 = vmul.f32 %v122, %v127
      %v130 = vsel %vm115, %v129, 0.0
      %131 = vadd.xlane.f32.xlu0 %v130
      %v132 = vpop.xlane.xlu0 %131
      %v133 = vld [vmem:[#allocation6] sm:$0xf]
      %v134 = vld [vmem:[#allocation6 + $0x4] sm:$0xf]
      %v135 = vunpack.c.l.bf16 %v133
      %v136 = vunpack.c.l.bf16 %v134
      %v138 = vlaneseq
      %v139 = vshrl.u32 %v138, 7
      %v140 = vsub.s32 0, %v139
      %v141 = vrot.slane %v121, %v140
      %v143 = vmul.f32 %v135, %v141
      %v144 = vmul.f32 %v136, %v141
      %vm145 = vcmask 261120
      %v146 = vsel %vm145, %v143, 0.0
      %147 = vadd.xlane.f32.xlu0 %v146
      %v148 = vpop.xlane.xlu0 %147
      %v149 = vsel %vm145, %v144, 0.0
      %150 = vadd.xlane.f32.xlu0 %v149
      %v151 = vpop.xlane.xlu0 %150
      %v154 = vlaneseq
      %v155 = vand.u32 %v154, 127
      %v156 = vlaneseq
      %v157 = vshrl.u32 %v156, 7
      %v158 = vsub.s32 %v155, %v157
      %v159 = vrot.slane %v148, %v158
      %v160 = vlaneseq
      %v161 = vshrl.u32 %v160, 7
      %v162 = vsub.s32 %v155, %v161
      %v163 = vrot.slane %v151, %v162
      %v164 = vsel %vm111, %v163, %v159
      %v166 = vadd.f32 %v132, %v164
      %v167 = vxor.u32 %v166, 2147483648
      %v168 = vmul.f32 %v167, 1.442695
      %v169 = vpow.pop %v168
      %v170 = vadd.f32 %v169, 1.0
      %v171 = vrcp.pop %v170
      %v172 = vmul.f32 1.0, %v171
      %vm173 = vcmask 58368
      %174 = vst.msk [vmem:[#allocation11] sm:$0x3] %vm173, %v172
    $region41: #{tpu_custom_call.1} parent=1 // pred_fallthru
      _
    // Predicated region
    $region42: #{tpu_custom_call.1} parent=1 // pred_check
      _
    $region43: #{tpu_custom_call.1} parent=1 // pred_check_branch
      %176 = sbr.rel (0) target = $region45
    $region44: #{tpu_custom_call.1} parent=1 // pred_region
      %s178 = ssub.s32 32, 32
      %179 = vsyncadd [#allocation5], %s178
      %s181 = sshll.u32 [#allocation11], 4
      %s182 = int_to_ptr.vmem [resolvable:$true] %s181
      %184 = dma.vmem_to_hbm [thread:$0]  %s182, 32, %s4, [#allocation5]
    $region45: #{tpu_custom_call.1} parent=1 // pred_fallthru
      _
    // Predicated region
    $region46: #{tpu_custom_call.1} parent=1 // pred_check
      _
    $region47: #{tpu_custom_call.1} parent=1 // pred_check_branch
      %186 = sbr.rel (0) target = $region49
    $region48: #{tpu_custom_call.1} parent=1 // pred_region
      %187 = dma.done [#allocation5], 32
    $region49: #{tpu_custom_call.1} parent=1 // pred_fallthru
      _
    %188 = vsyncpa [#allocation4], 1
    %189 = vsyncpa [#allocation7], 1
    %190 = vsyncpa [#allocation10], 1
    %191 = vsyncpa [#allocation5], 1

</llo_original>
